<compile_context>
chip_gen: v7x
topology: tpu7x:2x2x1
jax: 0.10.0
libtpu: 0.0.40
codegen_flags: <defaults>
</compile_context>

<pallas_src>
import functools

import jax
import jax.numpy as jnp
from jax import lax
from jax.experimental import pallas as pl
from jax.experimental.pallas import tpu as pltpu

STATE_ROWS = 3
STATE_COLS = 4
STATE_FLAT = STATE_ROWS * STATE_COLS  # 12

_SUB = 64              # timesteps per fully-unrolled sub-block (one straight-line region)
_DEFAULT_CHUNK = 4096  # timesteps per grid step
_MAX_CHUNK = 8192      # keep double-buffered, lane-padded input well under v5e scoped VMEM
_PALLAS_MIN_T = 128    # below this, pallas_call launch overhead dominates (auto fallback)


def _wrap_rnn_kernel(xs_ref, wblk_ref, b_ref, y_ref, h_ref, *, chunk, sub, last_count):
    """One grid step == one chunk of timesteps.

    xs_ref  : (chunk, 12) flattened inputs for this chunk              (VMEM)
    wblk_ref: (12, 12)    block_diag(W.T, W.T, W.T), grid-resident     (VMEM)
    b_ref   : (1, 12)     bias tiled to the flattened state            (VMEM)
    y_ref   : (1, 12)     output = relu(final hidden), last chunk only
    h_ref   : (1, 12)     f32 hidden state, persists across grid steps (scratch)

    `chunk`, `sub`, `last_count` are static Python ints.
    """
    c = pl.program_id(0)

    @pl.when(c == 0)
    def _init():
        h_ref[...] = jnp.zeros_like(h_ref)

    # Loop-invariant operands, loaded once.
    w = wblk_ref[...]   # (12, 12)
    b = b_ref[...]      # (1, 12)

    def gate_block(x_blk):
        # Non-recurrent part for a block of timesteps: Linear(4,4) on the flattened
        # state via one block-diagonal matmul, then the sum-sign decision gate.
        lin = jnp.dot(x_blk, w, preferred_element_type=jnp.float32) + b  # (rows, 12)
        s = jnp.sum(lin, axis=-1, keepdims=True)                         # (rows, 1)
        return jnp.where(s > 0.0, lin, -lin)

    def recur(g, h, count):
        # Fully-unrolled serial recurrence: one add + tanh per step, no masking.
        # Emitted in the same straight-line region as gate_block's matmul, so the
        # hoisted work overlaps the EUP-latency-bound tanh chain.
        for t in range(count):
            h = jnp.tanh(g[t:t + 1, :] + h)
        return h

    def sub_body(sb, h):
        base = pl.multiple_of(sb * sub, sub)
        g = gate_block(xs_ref[pl.ds(base, sub), :])   # (sub, 12), register-resident
        return recur(g, h, sub)

    def run_steps(h, count):
        # `count` is static: no dynamic bounds, no per-step masks.
        nfull, left = divmod(count, sub)
        if nfull > 0:
            h = lax.fori_loop(0, nfull, sub_body, h)
        if left > 0:
            base = nfull * sub                         # static
            nrows = ((left + 7) // 8) * 8              # sublane-aligned load / matmul M
            g = gate_block(xs_ref[pl.ds(base, nrows), :])
            h = recur(g, h, left)                      # padded rows never consumed
        return h

    if last_count == chunk:
        # Every chunk is full.
        h_ref[...] = run_steps(h_ref[...], chunk)
    else:
        c_last = pl.num_programs(0) - 1

        @pl.when(c != c_last)
        def _full_chunk():
            h_ref[...] = run_steps(h_ref[...], chunk)

        @pl.when(c == c_last)
        def _tail_chunk():
            h_ref[...] = run_steps(h_ref[...], last_count)

    @pl.when(c == pl.num_programs(0) - 1)
    def _finalize():
        y_ref[...] = jnp.maximum(h_ref[...], 0.0).astype(y_ref.dtype)


def wrap_rnn_reference(xs, weight, bias):
    """Pure-JAX reference matching the PyTorch module (also the small-T fallback)."""
    def step(h, x):
        lin = x @ weight.T + bias
        gated = jnp.where(jnp.sum(lin) > 0, lin, -lin)
        new_h = jnp.tanh(gated + h)
        return new_h, None

    h0 = jnp.zeros((STATE_ROWS, STATE_COLS), jnp.float32)
    h, _ = jax.lax.scan(step, h0, xs.astype(jnp.float32))
    return jax.nn.relu(h)


def wrap_rnn_forward(xs, weight, bias, *, chunk=None, use_pallas=None):
    """xs: (T, 3, 4); weight: (4, 4) (torch Linear convention y = x W^T + b);
    bias: (4,). Returns relu(final hidden state), shape (3, 4)."""
    T, R, C = xs.shape
    assert (R, C) == (STATE_ROWS, STATE_COLS)
    assert T >= 1, "T == 0 would leave the output undefined"

    if use_pallas is None:
        # Crossover: for short sequences the pallas_call launch + grid overhead
        # dominates; the lax.scan reference is faster there.
        use_pallas = T >= _PALLAS_MIN_T
    if not use_pallas:
        return wrap_rnn_reference(xs, weight, bias)

    # Flatten the (3, 4) state into a single 12-wide lane row; the Linear(4,4) on each
    # of the 3 rows becomes one matmul against a block-diagonal W.T with bias folded in.
    xs_flat = xs.reshape(T, STATE_FLAT).astype(jnp.float32)

    # Zero-pad the time axis to a multiple of 8 so all in-kernel block loads and matmul
    # M-dims are sublane-aligned. Padded rows are never consumed by the recurrence.
    t_pad = ((T + 7) // 8) * 8
    if t_pad != T:
        xs_flat = jnp.concatenate(
            [xs_flat, jnp.zeros((t_pad - T, STATE_FLAT), jnp.float32)], axis=0)

    wt = weight.T.astype(jnp.float32)                                  # (4, 4)
    wblk = jnp.kron(jnp.eye(STATE_ROWS, dtype=jnp.float32), wt)        # (12, 12)
    b_flat = jnp.tile(bias.astype(jnp.float32), STATE_ROWS).reshape(1, STATE_FLAT)

    # Chunk = timesteps per grid step. Real VMEM cost: the (chunk, 12) f32 block is
    # lane-padded to 128 lanes in VMEM => 512 B/step, double-buffered ~1 KiB/step.
    # chunk=4096 -> ~4 MiB total: safe on v5e/v6e/v7x scoped VMEM without overrides.
    if chunk is None:
        chunk = _DEFAULT_CHUNK
    chunk = min(chunk, _MAX_CHUNK)
    if chunk >= t_pad:
        chunk = t_pad                                   # single block == full (padded) dim
    else:
        chunk = max(_SUB, (chunk // _SUB) * _SUB)       # multiple of the sub-block size
        chunk = min(chunk, t_pad)

    grid = pl.cdiv(t_pad, chunk)          # == cdiv(T, chunk) since 8 | chunk
    last_count = T - (grid - 1) * chunk   # static number of valid steps in the last chunk
    assert 1 <= last_count <= chunk

    kernel = functools.partial(_wrap_rnn_kernel, chunk=chunk, sub=_SUB,
                               last_count=last_count)

    grid_spec = pltpu.PrefetchScalarGridSpec(
        num_scalar_prefetch=0,
        grid=(grid,),
        in_specs=[
            pl.BlockSpec((chunk, STATE_FLAT), lambda c: (c, 0)),        # xs chunk
            pl.BlockSpec((STATE_FLAT, STATE_FLAT), lambda c: (0, 0)),   # W block, resident
            pl.BlockSpec((1, STATE_FLAT), lambda c: (0, 0)),            # bias, resident
        ],
        out_specs=pl.BlockSpec((1, STATE_FLAT), lambda c: (0, 0)),      # same tile all chunks
        scratch_shapes=[
            pltpu.VMEM((1, STATE_FLAT), jnp.float32),   # hidden state, persists across grid
        ],
    )

    y_flat = pl.pallas_call(
        kernel,
        out_shape=jax.ShapeDtypeStruct((1, STATE_FLAT), jnp.float32),
        grid_spec=grid_spec,
        compiler_params=pltpu.CompilerParams(
            dimension_semantics=("arbitrary",),  # strictly sequential recurrence
        ),
    )(xs_flat, wblk, b_flat)

    return y_flat.reshape(STATE_ROWS, STATE_COLS)


if __name__ == "__main__":
    key = jax.random.PRNGKey(0)
    k_x, k_w, k_b = jax.random.split(key, 3)

    # Deterministic Linear(4, 4) init (torch default: U(-1/sqrt(in), 1/sqrt(in)))
    bound = 1.0 / jnp.sqrt(4.0)
    weight = jax.random.uniform(k_w, (4, 4), jnp.float32, -bound, bound)
    bias = jax.random.uniform(k_b, (4,), jnp.float32, -bound, bound)

    # (T, chunk) cases:
    #   (8,   None) : module's canonical small shape; single fully-static chunk
    #   (200, None) : single chunk, 3 fori sub-blocks + static 8-step leftover
    #   (200, 64)   : multi-chunk grid with a partial tail chunk (T % chunk != 0)
    #   (517, 128)  : T not a multiple of 8 -> exercises the zero-padding path
    for T, chunk in ((8, None), (200, None), (200, 64), (517, 128)):
        xs = jax.random.normal(k_x, (T, STATE_ROWS, STATE_COLS), dtype=jnp.float32)

        out = wrap_rnn_forward(xs, weight, bias, chunk=chunk, use_pallas=True)
        out = jax.block_until_ready(out)

        ref = wrap_rnn_reference(xs, weight, bias)
        assert out.shape == (STATE_ROWS, STATE_COLS)
        assert jnp.allclose(out, ref, atol=1e-4, rtol=1e-4), (T, chunk, out, ref)

    print("KERNEL_OK")
</pallas_src>

<mosaic_0001>
module attributes {stable_mosaic.version = 11 : i64} {
  func.func @_wrap_rnn_kernel(%arg0: i32, %arg1: memref<8x12xf32, #tpu.memory_space<vmem>>, %arg2: memref<12x12xf32, #tpu.memory_space<vmem>>, %arg3: memref<1x12xf32, #tpu.memory_space<vmem>>, %arg4: memref<1x12xf32, #tpu.memory_space<vmem>>, %arg5: memref<1x12xf32, #tpu.memory_space<vmem>>) attributes {dimension_semantics = [#tpu.dimension_semantics<arbitrary>], iteration_bounds = array<i64: 1>, scalar_prefetch = 0 : i64, scratch_operands = 1 : i64, tpu.core_type = #tpu.core_type<tc>, window_params = [{transform_indices = @transform_0, window_bounds = array<i64: 8, 12>}, {pipeline_mode = #tpu.pipeline_mode<synchronous>, transform_indices = @transform_1, window_bounds = array<i64: 12, 12>}, {pipeline_mode = #tpu.pipeline_mode<synchronous>, transform_indices = @transform_2, window_bounds = array<i64: 1, 12>}, {pipeline_mode = #tpu.pipeline_mode<synchronous>, transform_indices = @transform_3, window_bounds = array<i64: 1, 12>}]} {
    %c0_i32 = arith.constant 0 : i32
    %0 = arith.cmpi eq, %arg0, %c0_i32 : i32
    %1 = arith.extui %0 : i1 to i32
    %c0_i32_0 = arith.constant 0 : i32
    %2 = arith.cmpi ne, %1, %c0_i32_0 : i32
    scf.if %2 {
      %cst_15 = arith.constant 0.000000e+00 : f32
      %47 = vector.broadcast %cst_15 : f32 to vector<1x12xf32>
      %c0_16 = arith.constant 0 : index
      %c0_17 = arith.constant 0 : index
      %48 = vector.load %arg5[%c0_16, %c0_17] : memref<1x12xf32, #tpu.memory_space<vmem>>, vector<1x12xf32>
      tpu.vector_store %arg5[%c0_16, %c0_17], %47 {strides = array<i32>} : memref<1x12xf32, #tpu.memory_space<vmem>>, vector<1x12xf32>,
    } else {
    }
    %c0 = arith.constant 0 : index
    %c0_1 = arith.constant 0 : index
    %3 = vector.load %arg2[%c0, %c0_1] : memref<12x12xf32, #tpu.memory_space<vmem>>, vector<12x12xf32>
    %c0_2 = arith.constant 0 : index
    %c0_3 = arith.constant 0 : index
    %4 = vector.load %arg3[%c0_2, %c0_3] : memref<1x12xf32, #tpu.memory_space<vmem>>, vector<1x12xf32>
    %c0_4 = arith.constant 0 : index
    %c0_5 = arith.constant 0 : index
    %5 = vector.load %arg5[%c0_4, %c0_5] : memref<1x12xf32, #tpu.memory_space<vmem>>, vector<1x12xf32>
    %c0_6 = arith.constant 0 : index
    %c0_7 = arith.constant 0 : index
    %6 = vector.load %arg1[%c0_6, %c0_7] : memref<8x12xf32, #tpu.memory_space<vmem>>, vector<8x12xf32>
    %cst = arith.constant dense<0.000000e+00> : vector<8x12xf32>
    %7 = tpu.matmul %6, %3, %cst {dimension_numbers = #tpu.dot_dimension_numbers<[1], [0], [0], [1], [0, 0, 1, 1], [], []>} : vector<8x12xf32>, vector<12x12xf32>, vector<8x12xf32> -> vector<8x12xf32>
    %8 = vector.broadcast %4 : vector<1x12xf32> to vector<8x12xf32>
    %9 = arith.addf %7, %8 : vector<8x12xf32>
    %cst_8 = arith.constant dense<0.000000e+00> : vector<8xf32>
    %10 = vector.multi_reduction <add>, %9, %cst_8 [1] : vector<8x12xf32> to vector<8xf32>
    %11 = vector.shape_cast %10 : vector<8xf32> to vector<8x1xf32>
    %cst_9 = arith.constant 0.000000e+00 : f32
    %12 = vector.broadcast %cst_9 : f32 to vector<8x1xf32>
    %13 = arith.cmpf ogt, %11, %12 : vector<8x1xf32>
    %cst_10 = arith.constant 0.000000e+00 : f32
    %14 = vector.broadcast %cst_10 : f32 to vector<8x12xf32>
    %15 = arith.subf %14, %9 : vector<8x12xf32>
    %16 = vector.shape_cast %13 : vector<8x1xi1> to vector<8x1xi1>
    %17 = vector.broadcast %16 : vector<8x1xi1> to vector<8x12xi1>
    %18 = arith.select %17, %9, %15 : vector<8x12xi1>, vector<8x12xf32>
    %19 = vector.extract_strided_slice %18 {offsets = [0, 0], sizes = [1, 12], strides = [1, 1]} : vector<8x12xf32> to vector<1x12xf32>
    %20 = arith.addf %19, %5 : vector<1x12xf32>
    %21 = math.tanh %20 : vector<1x12xf32>
    %22 = vector.extract_strided_slice %18 {offsets = [1, 0], sizes = [1, 12], strides = [1, 1]} : vector<8x12xf32> to vector<1x12xf32>
    %23 = arith.addf %22, %21 : vector<1x12xf32>
    %24 = math.tanh %23 : vector<1x12xf32>
    %25 = vector.extract_strided_slice %18 {offsets = [2, 0], sizes = [1, 12], strides = [1, 1]} : vector<8x12xf32> to vector<1x12xf32>
    %26 = arith.addf %25, %24 : vector<1x12xf32>
    %27 = math.tanh %26 : vector<1x12xf32>
    %28 = vector.extract_strided_slice %18 {offsets = [3, 0], sizes = [1, 12], strides = [1, 1]} : vector<8x12xf32> to vector<1x12xf32>
    %29 = arith.addf %28, %27 : vector<1x12xf32>
    %30 = math.tanh %29 : vector<1x12xf32>
    %31 = vector.extract_strided_slice %18 {offsets = [4, 0], sizes = [1, 12], strides = [1, 1]} : vector<8x12xf32> to vector<1x12xf32>
    %32 = arith.addf %31, %30 : vector<1x12xf32>
    %33 = math.tanh %32 : vector<1x12xf32>
    %34 = vector.extract_strided_slice %18 {offsets = [5, 0], sizes = [1, 12], strides = [1, 1]} : vector<8x12xf32> to vector<1x12xf32>
    %35 = arith.addf %34, %33 : vector<1x12xf32>
    %36 = math.tanh %35 : vector<1x12xf32>
    %37 = vector.extract_strided_slice %18 {offsets = [6, 0], sizes = [1, 12], strides = [1, 1]} : vector<8x12xf32> to vector<1x12xf32>
    %38 = arith.addf %37, %36 : vector<1x12xf32>
    %39 = math.tanh %38 : vector<1x12xf32>
    %40 = vector.extract_strided_slice %18 {offsets = [7, 0], sizes = [1, 12], strides = [1, 1]} : vector<8x12xf32> to vector<1x12xf32>
    %41 = arith.addf %40, %39 : vector<1x12xf32>
    %42 = math.tanh %41 : vector<1x12xf32>
    %c0_11 = arith.constant 0 : index
    %c0_12 = arith.constant 0 : index
    %43 = vector.load %arg5[%c0_11, %c0_12] : memref<1x12xf32, #tpu.memory_space<vmem>>, vector<1x12xf32>
    tpu.vector_store %arg5[%c0_11, %c0_12], %42 {strides = array<i32>} : memref<1x12xf32, #tpu.memory_space<vmem>>, vector<1x12xf32>,
    %c0_i32_13 = arith.constant 0 : i32
    %44 = arith.cmpi eq, %arg0, %c0_i32_13 : i32
    %45 = arith.extui %44 : i1 to i32
    %c0_i32_14 = arith.constant 0 : i32
    %46 = arith.cmpi ne, %45, %c0_i32_14 : i32
    scf.if %46 {
      %c0_15 = arith.constant 0 : index
      %c0_16 = arith.constant 0 : index
      %47 = vector.load %arg5[%c0_15, %c0_16] : memref<1x12xf32, #tpu.memory_space<vmem>>, vector<1x12xf32>
      %cst_17 = arith.constant 0.000000e+00 : f32
      %48 = vector.broadcast %cst_17 : f32 to vector<1x12xf32>
      %49 = arith.maximumf %47, %48 : vector<1x12xf32>
      %c0_18 = arith.constant 0 : index
      %c0_19 = arith.constant 0 : index
      %50 = vector.load %arg4[%c0_18, %c0_19] : memref<1x12xf32, #tpu.memory_space<vmem>>, vector<1x12xf32>
      tpu.vector_store %arg4[%c0_18, %c0_19], %49 {strides = array<i32>} : memref<1x12xf32, #tpu.memory_space<vmem>>, vector<1x12xf32>,
    } else {
    }
    return
  }
  func.func @transform_0(%arg0: i32) -> (i32, i32) {
    %c0_i32 = arith.constant 0 : i32
    %c0_i32_0 = arith.constant 0 : i32
    return %arg0, %c0_i32 : i32, i32
  }
  func.func @transform_1(%arg0: i32) -> (i32, i32) {
    %c0_i32 = arith.constant 0 : i32
    %c0_i32_0 = arith.constant 0 : i32
    %c0_i32_1 = arith.constant 0 : i32
    return %c0_i32, %c0_i32_0 : i32, i32
  }
  func.func @transform_2(%arg0: i32) -> (i32, i32) {
    %c0_i32 = arith.constant 0 : i32
    %c0_i32_0 = arith.constant 0 : i32
    %c0_i32_1 = arith.constant 0 : i32
    return %c0_i32, %c0_i32_0 : i32, i32
  }
  func.func @transform_3(%arg0: i32) -> (i32, i32) {
    %c0_i32 = arith.constant 0 : i32
    %c0_i32_0 = arith.constant 0 : i32
    %c0_i32_1 = arith.constant 0 : i32
    return %c0_i32, %c0_i32_0 : i32, i32
  }
}

</mosaic_0001>

<llo_original>
// kernel: tpu_custom_call.1
$region0: #{tpu_custom_call.1}
  #allocation0 [shape = 'u32[]', space=smem, size = 0x4, offset = 0x4, fixed_abs, tag = 'smem constant byte address 0x4 - core index']
  #allocation1 [shape = 'u32[144,128]{1,0:T(1,128)}', space=vmem, size = 0x12000, scoped, tag = 'internal scratch']
  #allocation2 [shape = 'f32[1,12]{1,0:T(1,128)}', space=vmem, size = 0x200, scoped, tag = 'scratch operand']
  %s0 = inlined_call_operand.hbm [shape: f32[8,12], index: 0, kind: input, shape index: {}]
  %s1 = inlined_call_operand.hbm [shape: f32[12,12], index: 1, kind: input, shape index: {}]
  %s2 = inlined_call_operand.vmem [shape: f32[1,12], index: 2, kind: input, shape index: {}]
  %s3 = inlined_call_operand.hbm [shape: f32[1,12], index: 3, kind: output, shape index: {}]
  %s4 = sld [smem:[#allocation0]]
  $region38: #{tpu_custom_call.1} parent=0
    _
  %s6 = ssub.s32 1, %s4
  %s7 = scalar_select 0, %s6, %s4
  $region1: #{tpu_custom_call.1} parent=0
    #allocation3 [shape = 'u8[4096]{0}', space=vmem, size = 0x1000, scoped, tag = 'input window, operand 0, single buffered']
    #allocation4 [shape = 's32[1]{0}', space=sflag, size = 0x4, scoped, tag = 'scoped memory for tpu_custom_call.1']
    #allocation5 [shape = 's32[1]{0}', space=sflag, size = 0x4, scoped, tag = 'scoped memory for tpu_custom_call.1']
    #allocation6 [shape = 'u8[8192]{0}', space=vmem, size = 0x2000, scoped, tag = 'input window, operand 1, single buffered']
    #allocation7 [shape = 's32[1]{0}', space=sflag, size = 0x4, scoped, tag = 'scoped memory for tpu_custom_call.1']
    #allocation8 [shape = 'u8[512]{0}', space=vmem, size = 0x400, scoped, tag = 'output window, operand 0, single buffered']
    %8 = vsyncpa [#allocation4], 0
    %9 = vsyncpa [#allocation7], 0
    %10 = vsyncpa [#allocation5], 0
    // Predicated region
    $region2: #{tpu_custom_call.1} parent=1 // pred_check
      _
    $region3: #{tpu_custom_call.1} parent=1 // pred_check_branch
      %12 = sbr.rel (0) target = $region5
    $region4: #{tpu_custom_call.1} parent=1 // pred_region
      %s14 = ssub.s32 128, 128
      %15 = vsyncadd [#allocation4], %s14
      %s17 = sshll.u32 [#allocation3], 4
      %s18 = int_to_ptr.vmem [resolvable:$true] %s17
      %20 = dma.hbm_to_vmem [thread:$0]  %s0, 128, %s18, [#allocation4]
    $region5: #{tpu_custom_call.1} parent=1 // pred_fallthru
      _
    // Predicated region
    $region6: #{tpu_custom_call.1} parent=1 // pred_check
      _
    $region7: #{tpu_custom_call.1} parent=1 // pred_check_branch
      %22 = sbr.rel (0) target = $region9
    $region8: #{tpu_custom_call.1} parent=1 // pred_region
      %s24 = ssub.s32 256, 256
      %25 = vsyncadd [#allocation7], %s24
      %s26 = sshll.u32 [#allocation6], 4
      %s27 = int_to_ptr.vmem [resolvable:$true] %s26
      %32 = dma.hbm_to_vmem [thread:$0]  %s1, 256, %s27, [#allocation7], 128, 128, 8
    $region9: #{tpu_custom_call.1} parent=1 // pred_fallthru
      _
    // Predicated region
    $region10: #{tpu_custom_call.1} parent=1 // pred_check
      _
    $region11: #{tpu_custom_call.1} parent=1 // pred_check_branch
      %34 = sbr.rel (0) target = $region13
    $region12: #{tpu_custom_call.1} parent=1 // pred_region
      _
    $region13: #{tpu_custom_call.1} parent=1 // pred_fallthru
      _
    // Predicated region
    $region14: #{tpu_custom_call.1} parent=1 // pred_check
      _
    $region15: #{tpu_custom_call.1} parent=1 // pred_check_branch
      %36 = sbr.rel (0) target = $region17
    $region16: #{tpu_custom_call.1} parent=1 // pred_region
      %37 = dma.done [#allocation4], 128
    $region17: #{tpu_custom_call.1} parent=1 // pred_fallthru
      _
    // Predicated region
    $region18: #{tpu_custom_call.1} parent=1 // pred_check
      _
    $region19: #{tpu_custom_call.1} parent=1 // pred_check_branch
      %39 = sbr.rel (0) target = $region21
    $region20: #{tpu_custom_call.1} parent=1 // pred_region
      %40 = dma.done [#allocation7], 256
    $region21: #{tpu_custom_call.1} parent=1 // pred_fallthru
      _
    %p41 = scmp.eq.s32.totalorder 0, 0
    // Predicated region
    $region22: #{tpu_custom_call.1} parent=1 // pred_check
      %p42 = pneg %p41
    $region23: #{tpu_custom_call.1} parent=1 // pred_check_branch
      %44 = sbr.rel (%p42) target = $region25
    $region24: #{tpu_custom_call.1} parent=1 // pred_region
      %vm45 = vcmask 90112
      %46 = vst.msk [vmem:[#allocation2] sm:$0x1] %vm45, 0.0
    $region25: #{tpu_custom_call.1} parent=1 // pred_fallthru
      _
    %v47 = vld [vmem:[#allocation6] sm:$0xff]
    %v48 = vld [vmem:[#allocation6 + $0x8] sm:$0xf]
    %v49 = vld [vmem:[%s2] sm:$0x1]
    %v50 = vld [vmem:[#allocation2] sm:$0x1]
    %v51 = vld [vmem:[#allocation3] sm:$0xff]
    %v53 = vlaneseq
    %v54 = vshrl.u32 %v53, 7
    %v55 = vsub.s32 0, %v54
    %v56 = vrot.slane %v49, %v55
    %vm58 = vcmask 97280
    %v60 = vsel %vm58, %v51, 0
    %vm62 = vcmask 1043456
    %v64 = vsel %vm62, %v48, 0
    %66 = vmatprep.subr.mxu0 0.0
    %67 = vmatpush1.msra.mxu0 %v47
    %68 = vmatprep.subr.mxu0 0.0
    %69 = vmatpush1.msra.mxu0 %v64
    %70 = vmatprep.subr.mxu0 0.0
    %71 = vmatpush1.msra.mxu0 0.0
    %72 = vmatprep.subr.mxu0 0.0
    %73 = vmatpush1.msra.mxu0 0.0
    %74 = vmatprep.subr.mxu0 0.0
    %75 = vmatpush1.msra.mxu0 0.0
    %76 = vmatprep.subr.mxu0 0.0
    %77 = vmatpush1.msra.mxu0 0.0
    %78 = vmatprep.subr.mxu0 0.0
    %79 = vmatpush1.msra.mxu0 0.0
    %80 = vmatprep.subr.mxu0 0.0
    %81 = vmatpush1.msra.mxu0 0.0
    %82 = vmatprep.subr.mxu0 0.0
    %83 = vmatpush1.msra.mxu0 0.0
    %84 = vmatprep.subr.mxu0 0.0
    %85 = vmatpush1.msra.mxu0 0.0
    %86 = vmatprep.subr.mxu0 0.0
    %87 = vmatpush1.msra.mxu0 0.0
    %88 = vmatprep.subr.mxu0 0.0
    %89 = vmatpush1.msra.mxu0 0.0
    %90 = vmatprep.subr.mxu0 0.0
    %91 = vmatpush1.msra.mxu0 0.0
    %92 = vmatprep.subr.mxu0 0.0
    %93 = vmatpush1.msra.mxu0 0.0
    %94 = vmatprep.subr.mxu0 0.0
    %95 = vmatpush1.msra.mxu0 0.0
    %96 = vmatprep.subr.mxu0 0.0
    %97 = vmatpush1.msra.mxu0 0.0
    %98 = vmatprep.subr.mxu0 0.0
    %99 = vmatpush1.msra.mxu0 0.0
    %100 = vmatprep.subr.mxu0 0.0
    %101 = vmatpush1.msra.mxu0 0.0
    %102 = vmatprep.subr.mxu0 0.0
    %103 = vmatpush1.msra.mxu0 0.0
    %104 = vmatprep.subr.mxu0 0.0
    %105 = vmatpush1.msra.mxu0 0.0
    %106 = vmatprep.subr.mxu0 0.0
    %107 = vmatpush1.msra.mxu0 0.0
    %108 = vmatprep.subr.mxu0 0.0
    %109 = vmatpush1.msra.mxu0 0.0
    %110 = vmatprep.subr.mxu0 0.0
    %111 = vmatpush1.msra.mxu0 0.0
    %112 = vmatprep.subr.mxu0 0.0
    %113 = vmatpush1.msra.mxu0 0.0
    %114 = vmatprep.subr.mxu0 0.0
    %115 = vmatpush1.msra.mxu0 0.0
    %116 = vmatprep.subr.mxu0 0.0
    %117 = vmatpush1.msra.mxu0 0.0
    %118 = vmatprep.subr.mxu0 0.0
    %119 = vmatpush1.msra.mxu0 0.0
    %120 = vmatprep.subr.mxu0 0.0
    %121 = vmatpush1.msra.mxu0 0.0
    %122 = vmatprep.subr.mxu0 0.0
    %123 = vmatpush1.msra.mxu0 0.0
    %124 = vmatprep.subr.mxu0 0.0
    %125 = vmatpush1.msra.mxu0 0.0
    %126 = vmatprep.subr.mxu0 0.0
    %127 = vmatpush1.msra.mxu0 0.0
    %128 = vmatprep.subr.mxu0 0.0
    %129 = vmatpush1.msra.mxu0 0.0
    %130 = vmatprep.mubr.f32.mxu0 0.0
    %131 = vmatmul.mubr.f32.gmra.mrb[0].mxu0 %v60
    %v132 = vpop.f32.mrb[0].mxu0
    %v133 = vadd.f32 %v56, %v132
    %v134 = vpop.f32.mrb[0].mxu0
    %135 = vdwg.mxu0
    %v136 = vsel %vm58, %v133, 0.0
    %137 = vadd.xlane.f32.xlu0 %v136
    %v138 = vpop.xlane.xlu0 %137
    %vm139 = vcmp.gt.f32.partialorder %v138, 0.0
    %v140 = vsub.f32 0.0, %v133
    %v141 = vsel %vm139, 1, 0
    %vm142 = vcmp.eq.s32.totalorder %v141, 1
    %v143 = vsel %vm142, %v133, %v140
    %v144 = vadd.f32 %v143, %v50
    %v145 = vtanh.pop %v144
    %v147 = vrot.slane %v145, 7
    %v149 = vadd.f32 %v143, %v147
    %v150 = vtanh.pop %v149
    %v152 = vrot.slane %v150, 7
    %v154 = vadd.f32 %v143, %v152
    %v155 = vtanh.pop %v154
    %v157 = vrot.slane %v155, 7
    %v159 = vadd.f32 %v143, %v157
    %v160 = vtanh.pop %v159
    %v162 = vrot.slane %v160, 7
    %v164 = vadd.f32 %v143, %v162
    %v165 = vtanh.pop %v164
    %v167 = vrot.slane %v165, 7
    %v169 = vadd.f32 %v143, %v167
    %v170 = vtanh.pop %v169
    %v172 = vrot.slane %v170, 7
    %v174 = vadd.f32 %v143, %v172
    %v175 = vtanh.pop %v174
    %v177 = vrot.slane %v175, 7
    %v179 = vadd.f32 %v143, %v177
    %v180 = vtanh.pop %v179
    %vm181 = vcmask 97287
    %182 = vst.msk [vmem:[#allocation2 - $0x7] sm:$0x80] %vm181, %v180
    // Predicated region
    $region26: #{tpu_custom_call.1} parent=1 // pred_check
      %p183 = pneg %p41
    $region27: #{tpu_custom_call.1} parent=1 // pred_check_branch
      %185 = sbr.rel (%p183) target = $region29
    $region28: #{tpu_custom_call.1} parent=1 // pred_region
      %v186 = vld [vmem:[#allocation2] sm:$0x1]
      %v187 = vmax.f32 %v186, 0.0
      %vm188 = vcmask 90112
      %189 = vst.msk [vmem:[#allocation8] sm:$0x1] %vm188, %v187
    $region29: #{tpu_custom_call.1} parent=1 // pred_fallthru
      _
    // Predicated region
    $region30: #{tpu_custom_call.1} parent=1 // pred_check
      _
    $region31: #{tpu_custom_call.1} parent=1 // pred_check_branch
      %191 = sbr.rel (0) target = $region33
    $region32: #{tpu_custom_call.1} parent=1 // pred_region
      %s193 = ssub.s32 16, 16
      %194 = vsyncadd [#allocation5], %s193
      %s196 = sshll.u32 [#allocation8], 4
      %s197 = int_to_ptr.vmem [resolvable:$true] %s196
      %199 = dma.vmem_to_hbm [thread:$0]  %s197, 16, %s3, [#allocation5]
    $region33: #{tpu_custom_call.1} parent=1 // pred_fallthru
      _
    // Predicated region
    $region34: #{tpu_custom_call.1} parent=1 // pred_check
      _
    $region35: #{tpu_custom_call.1} parent=1 // pred_check_branch
      %201 = sbr.rel (0) target = $region37
    $region36: #{tpu_custom_call.1} parent=1 // pred_region
      %202 = dma.done [#allocation5], 16
    $region37: #{tpu_custom_call.1} parent=1 // pred_fallthru
      _
    %203 = vsyncpa [#allocation4], 1
    %204 = vsyncpa [#allocation7], 1
    %205 = vsyncpa [#allocation5], 1

</llo_original>
